<compile_context>
chip_gen: v5e
topology: v5e:2x2
jax: 0.10.0
libtpu: 0.0.40
codegen_flags: <defaults>
</compile_context>

<pallas_src>
import functools

import jax
import jax.numpy as jnp
from jax.experimental import pallas as pl
from jax.experimental.pallas import tpu as pltpu


def _round_up(a: int, b: int) -> int:
    return (a + b - 1) // b * b


def _sublane_multiple(dtype_bytes: int, has_u8_masks: bool) -> int:
    if has_u8_masks:
        return 32
    return {1: 32, 2: 16}.get(dtype_bytes, 8)


def _estimate_vmem(tm, th, Din, H, Dout, dtype_bytes, dropout, full_h):
    """Conservative VMEM estimate (double-buffered inputs/outputs + f32 temps)."""
    b = 0
    b += 2 * tm * Din * dtype_bytes                    # x row tile
    b += 2 * (Din * th + th * Dout) * dtype_bytes      # W1 / W2 slabs
    b += 2 * (th + Dout) * dtype_bytes                 # biases
    b += 2 * tm * Dout * dtype_bytes                   # output tile
    if dropout:
        b += 2 * tm * th + 2 * tm * Dout               # uint8 masks
    b += tm * th * 4                                   # f32 GELU intermediate
    if not full_h:
        b += tm * Dout * 4                             # f32 accumulator scratch
    return b


def _choose_tiles(M, Din, H, Dout, dtype_bytes, dropout, budget):
    """Pick (tm, th, full_h) under a VMEM budget, preferring weight residency."""
    sub = _sublane_multiple(dtype_bytes, dropout)
    m_ceil = _round_up(M, sub)

    tm_cands = [t for t in (1024, 768, 512, 384, 256, 128, 64, 32, 16, 8)
                if t % sub == 0 and t <= m_ceil]
    if not tm_cands:
        tm_cands = [m_ceil]
    # Megacore / v7x: keep at least 2 row tiles when M allows it.
    meg = [t for t in tm_cands if 2 * t <= m_ceil]
    if meg:
        tm_cands = meg

    # Hidden-dim slabs: multiples of 128 that divide H (largest first).
    th_cands = [d for d in range((H // 128) * 128, 0, -128) if H % d == 0]
    if not th_cands:
        th_cands = [H]

    # Preferred: full weight residency (th == H, 1-D grid, weights fetched once).
    for tm in tm_cands:
        if _estimate_vmem(tm, H, Din, H, Dout, dtype_bytes, dropout, True) <= budget:
            return tm, H, True
    # Fallback: stream hidden-dim slabs with an f32 accumulator.
    for tm in tm_cands:
        for th in th_cands:
            if _estimate_vmem(tm, th, Din, H, Dout, dtype_bytes, dropout, False) <= budget:
                return tm, th, th == H
    return tm_cands[-1], th_cands[-1], th_cands[-1] == H


def _mlp_kernel(*refs, apply_dropout: bool, inv_keep: float, reduce_h: bool):
    if reduce_h:
        *refs, acc_ref = refs
    else:
        acc_ref = None
    if apply_dropout:
        x_ref, w1_ref, b1_ref, w2_ref, b2_ref, m1_ref, m2_ref, o_ref = refs
    else:
        x_ref, w1_ref, b1_ref, w2_ref, b2_ref, o_ref = refs
        m1_ref = m2_ref = None

    # fc1 on the MXU (f32 accumulation) + bias + GELU (tanh approx -> EUP).
    h = jnp.dot(x_ref[...], w1_ref[...], preferred_element_type=jnp.float32)
    h = h + b1_ref[...].astype(jnp.float32)
    h = jax.nn.gelu(h, approximate=True)
    if apply_dropout:
        h = h * (m1_ref[...].astype(jnp.float32) * inv_keep)

    # fc2 (partial) product for this hidden slab / the full hidden dim.
    part = jnp.dot(h.astype(w2_ref.dtype), w2_ref[...],
                   preferred_element_type=jnp.float32)

    def _epilogue(acc):
        out = acc + b2_ref[...].astype(jnp.float32)
        if apply_dropout:
            out = out * (m2_ref[...].astype(jnp.float32) * inv_keep)
        o_ref[...] = out.astype(o_ref.dtype)

    if reduce_h:
        k = pl.program_id(1)

        @pl.when(k == 0)
        def _init():
            acc_ref[...] = jnp.zeros_like(acc_ref)

        acc_ref[...] += part

        @pl.when(k == pl.num_programs(1) - 1)
        def _finalize():
            _epilogue(acc_ref[...])
    else:
        _epilogue(part)


def mlp_pallas(x, w1, b1, w2, b2, *, drop_mask1=None, drop_mask2=None,
               drop_rate: float = 0.0, tm: int = None, th: int = None,
               vmem_budget_bytes: int = 40 << 20):
    """Fused ViT-Mlp forward.

    x : (B, N, Din);  w1 : (Din, H);  b1 : (H,);  w2 : (H, Dout);  b2 : (Dout,)
    drop_mask1 / drop_mask2 : optional uint8/bool {0,1} KEEP masks of shape
    (B*N, H) / (B*N, Dout); the 1/(1-drop_rate) scale is applied in-kernel in
    f32.  When both masks are omitted this is the eval / drop=0.0 path.
    """
    B, N, Din = x.shape
    H = w1.shape[1]
    Dout = w2.shape[1]
    M = B * N

    if (drop_mask1 is None) != (drop_mask2 is None):
        raise ValueError("Provide both drop_mask1 and drop_mask2, or neither.")
    apply_dropout = drop_mask1 is not None
    keep = 1.0 - float(drop_rate)
    if apply_dropout and keep <= 0.0:
        raise ValueError("drop_rate must be < 1.0 when dropout masks are given.")
    inv_keep = (1.0 / keep) if apply_dropout else 1.0

    dtype_bytes = x.dtype.itemsize
    sub = _sublane_multiple(dtype_bytes, apply_dropout)

    auto_tm, auto_th, _ = _choose_tiles(M, Din, H, Dout, dtype_bytes,
                                        apply_dropout, vmem_budget_bytes)
    if tm is None:
        tm = auto_tm
    if th is None:
        th = auto_th
    tm = _round_up(min(tm, _round_up(M, sub)), sub)
    if H % th != 0:          # forced th that doesn't divide H -> safe auto value
        th = auto_th
    reduce_h = th < H

    M_pad = _round_up(M, tm)
    xm = x.reshape(M, Din)
    if M_pad != M:
        xm = jnp.pad(xm, ((0, M_pad - M), (0, 0)))
    b1r = b1.reshape(1, H)
    b2r = b2.reshape(1, Dout)

    if reduce_h:
        x_spec  = pl.BlockSpec((tm, Din),  lambda i, k: (i, 0))
        w1_spec = pl.BlockSpec((Din, th),  lambda i, k: (0, k))
        b1_spec = pl.BlockSpec((1, th),    lambda i, k: (0, k))
        w2_spec = pl.BlockSpec((th, Dout), lambda i, k: (k, 0))
        b2_spec = pl.BlockSpec((1, Dout),  lambda i, k: (0, 0))
        m1_spec = pl.BlockSpec((tm, th),   lambda i, k: (i, k))
        m2_spec = pl.BlockSpec((tm, Dout), lambda i, k: (i, 0))
        o_spec  = pl.BlockSpec((tm, Dout), lambda i, k: (i, 0))
        grid = (M_pad // tm, H // th)
        scratch = [pltpu.VMEM((tm, Dout), jnp.float32)]
        dims = ("parallel", "arbitrary")
    else:
        # Weight-resident path: constant W1/W2 index maps -> fetched once.
        x_spec  = pl.BlockSpec((tm, Din),  lambda i: (i, 0))
        w1_spec = pl.BlockSpec((Din, H),   lambda i: (0, 0))
        b1_spec = pl.BlockSpec((1, H),     lambda i: (0, 0))
        w2_spec = pl.BlockSpec((H, Dout),  lambda i: (0, 0))
        b2_spec = pl.BlockSpec((1, Dout),  lambda i: (0, 0))
        m1_spec = pl.BlockSpec((tm, H),    lambda i: (i, 0))
        m2_spec = pl.BlockSpec((tm, Dout), lambda i: (i, 0))
        o_spec  = pl.BlockSpec((tm, Dout), lambda i: (i, 0))
        grid = (M_pad // tm,)
        scratch = []
        dims = ("parallel",)

    in_specs = [x_spec, w1_spec, b1_spec, w2_spec, b2_spec]
    args = [xm, w1, b1r, w2, b2r]
    if apply_dropout:
        m1 = drop_mask1.reshape(M, H).astype(jnp.uint8)
        m2 = drop_mask2.reshape(M, Dout).astype(jnp.uint8)
        if M_pad != M:
            m1 = jnp.pad(m1, ((0, M_pad - M), (0, 0)))
            m2 = jnp.pad(m2, ((0, M_pad - M), (0, 0)))
        in_specs += [m1_spec, m2_spec]
        args += [m1, m2]

    est = _estimate_vmem(tm, th, Din, H, Dout, dtype_bytes, apply_dropout,
                         not reduce_h)
    vmem_limit = int(min(max(est * 3 // 2, 32 << 20), 56 << 20))

    kernel = functools.partial(_mlp_kernel, apply_dropout=apply_dropout,
                               inv_keep=inv_keep, reduce_h=reduce_h)

    out = pl.pallas_call(
        kernel,
        out_shape=jax.ShapeDtypeStruct((M_pad, Dout), x.dtype),
        grid_spec=pltpu.PrefetchScalarGridSpec(
            num_scalar_prefetch=0,
            grid=grid,
            in_specs=in_specs,
            out_specs=o_spec,
            scratch_shapes=scratch,
        ),
        compiler_params=pltpu.CompilerParams(
            dimension_semantics=dims,
            vmem_limit_bytes=vmem_limit,
        ),
    )(*args)

    if M_pad != M:
        out = out[:M]
    return out.reshape(B, N, Dout)


if __name__ == "__main__":
    key = jax.random.PRNGKey(0)
    B, N, Din = 2, 8, 32            # batch=2, seq=8, in_features=32
    H, Dout = 4 * Din, Din          # hidden_features=128, out_features=32

    kx, kw1, kb1, kw2, kb2, kd1, kd2, kx2 = jax.random.split(key, 8)
    x = jax.random.normal(kx, (B, N, Din), dtype=jnp.float32)
    w1 = jax.random.normal(kw1, (Din, H), dtype=jnp.float32) * 0.05
    b1 = jax.random.normal(kb1, (H,), dtype=jnp.float32) * 0.05
    w2 = jax.random.normal(kw2, (H, Dout), dtype=jnp.float32) * 0.05
    b2 = jax.random.normal(kb2, (Dout,), dtype=jnp.float32) * 0.05

    def mlp_ref(x, w1, b1, w2, b2, m1=None, m2=None, inv_keep=1.0):
        xm = x.reshape(-1, x.shape[-1]).astype(jnp.float32)
        h = xm @ w1.astype(jnp.float32) + b1.astype(jnp.float32)
        h = jax.nn.gelu(h, approximate=True)
        if m1 is not None:
            h = h * m1.astype(jnp.float32) * inv_keep
        o = h @ w2.astype(jnp.float32) + b2.astype(jnp.float32)
        if m2 is not None:
            o = o * m2.astype(jnp.float32) * inv_keep
        return o.reshape(x.shape[0], x.shape[1], -1)

    ok = True

    # 1) Eval / drop=0.0 path (PyTorch default: Dropout is identity).
    out = jax.block_until_ready(mlp_pallas(x, w1, b1, w2, b2))
    ref = mlp_ref(x, w1, b1, w2, b2)
    ok &= bool(jnp.allclose(out, ref, rtol=2e-3, atol=2e-3))

    # 2) Training-mode dropout: uint8 {0,1} keep-masks, exact f32 1/keep scale.
    drop = 0.25
    M = B * N
    m1 = jax.random.bernoulli(kd1, 1.0 - drop, (M, H)).astype(jnp.uint8)
    m2 = jax.random.bernoulli(kd2, 1.0 - drop, (M, Dout)).astype(jnp.uint8)
    out_tr = jax.block_until_ready(
        mlp_pallas(x, w1, b1, w2, b2, drop_mask1=m1, drop_mask2=m2, drop_rate=drop))
    ref_tr = mlp_ref(x, w1, b1, w2, b2, m1=m1, m2=m2, inv_keep=1.0 / (1.0 - drop))
    ok &= bool(jnp.allclose(out_tr, ref_tr, rtol=2e-3, atol=2e-3))

    # 3) Hidden-dim-streaming (reduction) path, forced th < H.
    B3, N3, Din3, H3 = 2, 64, 32, 256
    x3 = jax.random.normal(kx2, (B3, N3, Din3), dtype=jnp.float32)
    w13 = jax.random.normal(kw1, (Din3, H3), dtype=jnp.float32) * 0.05
    b13 = jax.random.normal(kb1, (H3,), dtype=jnp.float32) * 0.05
    w23 = jax.random.normal(kw2, (H3, Din3), dtype=jnp.float32) * 0.05
    b23 = jax.random.normal(kb2, (Din3,), dtype=jnp.float32) * 0.05
    out3 = jax.block_until_ready(mlp_pallas(x3, w13, b13, w23, b23, th=128))
    ref3 = mlp_ref(x3, w13, b13, w23, b23)
    ok &= bool(jnp.allclose(out3, ref3, rtol=2e-3, atol=2e-3))

    # 4) bf16 operands (native MXU fast path, f32 accumulation).
    outb = jax.block_until_ready(mlp_pallas(
        x.astype(jnp.bfloat16), w1.astype(jnp.bfloat16), b1.astype(jnp.bfloat16),
        w2.astype(jnp.bfloat16), b2.astype(jnp.bfloat16)))
    refb = mlp_ref(x, w1, b1, w2, b2)
    ok &= bool(jnp.allclose(outb.astype(jnp.float32), refb, rtol=5e-2, atol=5e-2))

    if ok:
        print("KERNEL_OK")
    else:
        raise SystemExit("Mlp kernel output mismatch")
</pallas_src>

<mosaic_0001>
module attributes {stable_mosaic.version = 11 : i64} {
  func.func @_mlp_kernel(%arg0: i32, %arg1: memref<8x32xf32, #tpu.memory_space<vmem>>, %arg2: memref<32x128xf32, #tpu.memory_space<vmem>>, %arg3: memref<1x128xf32, #tpu.memory_space<vmem>>, %arg4: memref<128x32xf32, #tpu.memory_space<vmem>>, %arg5: memref<1x32xf32, #tpu.memory_space<vmem>>, %arg6: memref<8x32xf32, #tpu.memory_space<vmem>>) attributes {dimension_semantics = [#tpu.dimension_semantics<parallel>], iteration_bounds = array<i64: 2>, scalar_prefetch = 0 : i64, scratch_operands = 0 : i64, tpu.core_type = #tpu.core_type<tc>, window_params = [{transform_indices = @transform_0, window_bounds = array<i64: 8, 32>}, {pipeline_mode = #tpu.pipeline_mode<synchronous>, transform_indices = @transform_1, window_bounds = array<i64: 32, 128>}, {pipeline_mode = #tpu.pipeline_mode<synchronous>, transform_indices = @transform_2, window_bounds = array<i64: 1, 128>}, {pipeline_mode = #tpu.pipeline_mode<synchronous>, transform_indices = @transform_3, window_bounds = array<i64: 128, 32>}, {pipeline_mode = #tpu.pipeline_mode<synchronous>, transform_indices = @transform_4, window_bounds = array<i64: 1, 32>}, {transform_indices = @transform_5, window_bounds = array<i64: 8, 32>}]} {
    %c0 = arith.constant 0 : index
    %c0_0 = arith.constant 0 : index
    %0 = vector.load %arg1[%c0, %c0_0] : memref<8x32xf32, #tpu.memory_space<vmem>>, vector<8x32xf32>
    %c0_1 = arith.constant 0 : index
    %c0_2 = arith.constant 0 : index
    %1 = vector.load %arg2[%c0_1, %c0_2] : memref<32x128xf32, #tpu.memory_space<vmem>>, vector<32x128xf32>
    %cst = arith.constant dense<0.000000e+00> : vector<8x128xf32>
    %2 = tpu.matmul %0, %1, %cst {dimension_numbers = #tpu.dot_dimension_numbers<[1], [0], [0], [1], [0, 0, 1, 1], [], []>} : vector<8x32xf32>, vector<32x128xf32>, vector<8x128xf32> -> vector<8x128xf32>
    %c0_3 = arith.constant 0 : index
    %c0_4 = arith.constant 0 : index
    %3 = vector.load %arg3[%c0_3, %c0_4] : memref<1x128xf32, #tpu.memory_space<vmem>>, vector<1x128xf32>
    %4 = vector.broadcast %3 : vector<1x128xf32> to vector<8x128xf32>
    %5 = arith.addf %2, %4 : vector<8x128xf32>
    %6 = arith.mulf %5, %5 : vector<8x128xf32>
    %7 = arith.mulf %5, %6 : vector<8x128xf32>
    %cst_5 = arith.constant 4.471500e-02 : f32
    %8 = vector.broadcast %cst_5 : f32 to vector<8x128xf32>
    %9 = arith.mulf %8, %7 : vector<8x128xf32>
    %10 = arith.addf %5, %9 : vector<8x128xf32>
    %cst_6 = arith.constant 0.797884583 : f32
    %11 = vector.broadcast %cst_6 : f32 to vector<8x128xf32>
    %12 = arith.mulf %11, %10 : vector<8x128xf32>
    %13 = math.tanh %12 : vector<8x128xf32>
    %cst_7 = arith.constant 1.000000e+00 : f32
    %14 = vector.broadcast %cst_7 : f32 to vector<8x128xf32>
    %15 = arith.addf %14, %13 : vector<8x128xf32>
    %cst_8 = arith.constant 5.000000e-01 : f32
    %16 = vector.broadcast %cst_8 : f32 to vector<8x128xf32>
    %17 = arith.mulf %16, %15 : vector<8x128xf32>
    %18 = arith.mulf %5, %17 : vector<8x128xf32>
    %c0_9 = arith.constant 0 : index
    %c0_10 = arith.constant 0 : index
    %19 = vector.load %arg4[%c0_9, %c0_10] : memref<128x32xf32, #tpu.memory_space<vmem>>, vector<128x32xf32>
    %cst_11 = arith.constant dense<0.000000e+00> : vector<8x32xf32>
    %20 = tpu.matmul %18, %19, %cst_11 {dimension_numbers = #tpu.dot_dimension_numbers<[1], [0], [0], [1], [0, 0, 1, 1], [], []>} : vector<8x128xf32>, vector<128x32xf32>, vector<8x32xf32> -> vector<8x32xf32>
    %c0_12 = arith.constant 0 : index
    %c0_13 = arith.constant 0 : index
    %21 = vector.load %arg5[%c0_12, %c0_13] : memref<1x32xf32, #tpu.memory_space<vmem>>, vector<1x32xf32>
    %22 = vector.broadcast %21 : vector<1x32xf32> to vector<8x32xf32>
    %23 = arith.addf %20, %22 : vector<8x32xf32>
    %c0_14 = arith.constant 0 : index
    %c0_15 = arith.constant 0 : index
    %24 = vector.load %arg6[%c0_14, %c0_15] : memref<8x32xf32, #tpu.memory_space<vmem>>, vector<8x32xf32>
    tpu.vector_store %arg6[%c0_14, %c0_15], %23 {strides = array<i32>} : memref<8x32xf32, #tpu.memory_space<vmem>>, vector<8x32xf32>,
    return
  }
  func.func @transform_0(%arg0: i32) -> (i32, i32) {
    %c0_i32 = arith.constant 0 : i32
    %c0_i32_0 = arith.constant 0 : i32
    return %arg0, %c0_i32 : i32, i32
  }
  func.func @transform_1(%arg0: i32) -> (i32, i32) {
    %c0_i32 = arith.constant 0 : i32
    %c0_i32_0 = arith.constant 0 : i32
    %c0_i32_1 = arith.constant 0 : i32
    return %c0_i32, %c0_i32_0 : i32, i32
  }
  func.func @transform_2(%arg0: i32) -> (i32, i32) {
    %c0_i32 = arith.constant 0 : i32
    %c0_i32_0 = arith.constant 0 : i32
    %c0_i32_1 = arith.constant 0 : i32
    return %c0_i32, %c0_i32_0 : i32, i32
  }
  func.func @transform_3(%arg0: i32) -> (i32, i32) {
    %c0_i32 = arith.constant 0 : i32
    %c0_i32_0 = arith.constant 0 : i32
    %c0_i32_1 = arith.constant 0 : i32
    return %c0_i32, %c0_i32_0 : i32, i32
  }
  func.func @transform_4(%arg0: i32) -> (i32, i32) {
    %c0_i32 = arith.constant 0 : i32
    %c0_i32_0 = arith.constant 0 : i32
    %c0_i32_1 = arith.constant 0 : i32
    return %c0_i32, %c0_i32_0 : i32, i32
  }
  func.func @transform_5(%arg0: i32) -> (i32, i32) {
    %c0_i32 = arith.constant 0 : i32
    %c0_i32_0 = arith.constant 0 : i32
    return %arg0, %c0_i32 : i32, i32
  }
}

</mosaic_0001>

<llo_original>
// kernel: tpu_custom_call.1
$region0: #{tpu_custom_call.1}
  #allocation0 [shape = 'u32[]', space=smem, size = 0x4, offset = 0x4, fixed_abs, tag = 'smem constant byte address 0x4 - core index']
  #allocation1 [shape = 'u32[72,128]{1,0:T(1,128)}', space=vmem, size = 0x9000, scoped, tag = 'internal scratch']
  %s0 = inlined_call_operand.vmem [shape: f32[16,32], index: 0, kind: input, shape index: {}]
  %s1 = inlined_call_operand.vmem [shape: f32[32,128], index: 1, kind: input, shape index: {}]
  %s2 = inlined_call_operand.vmem [shape: f32[1,128], index: 2, kind: input, shape index: {}]
  %s3 = inlined_call_operand.vmem [shape: f32[128,32], index: 3, kind: input, shape index: {}]
  %s4 = inlined_call_operand.vmem [shape: f32[1,32], index: 4, kind: input, shape index: {}]
  %s5 = inlined_call_operand.hbm [shape: f32[16,32], index: 5, kind: output, shape index: {}]
  %s6 = sld [smem:[#allocation0]]
  $region53: #{tpu_custom_call.1} parent=0
    _
  %s8 = ssub.s32 1, %s6
  %s9 = scalar_select 0, %s8, %s6
  $region1: #{tpu_custom_call.1} parent=0
    #allocation2 [shape = 'u8[8192]{0}', space=vmem, size = 0x2000, scoped, tag = 'output window, operand 0']
    #allocation3 [shape = 's32[2]{0}', space=sflag, size = 0x8, scoped, tag = 'scoped memory for tpu_custom_call.1']
    %10 = vsyncpa [#allocation3], 0
    %s11 = scalar_lea.sflag [#allocation3], 1
    %12 = vsyncpa %s11, 0
    loop: start=0, step=1, limit=4
    $region2: #{tpu_custom_call.1} parent=1 // loop_pre_header
      _
    $region3: #{tpu_custom_call.1} parent=1 // loop_header
      %s14 = sphi 0, %s18
      %p15 = scmp.ge.s32.totalorder %s14, 4
      %s24 = sphi 0, %s26
      %s27 = sphi 0, %s24
      %s28 = sphi 0, %s27
      %s44 = sphi 0, %s28
      %s48 = sphi 0, %s48
      %s50 = sphi 0, %s48
      %s51 = sphi 0, %s50
      %s65 = sphi 0, %s51
      %s69 = sphi 0, %s69
      %s71 = sphi 0, %s69
      %s72 = sphi 0, %s71
      %s86 = sphi 0, %s72
      %s90 = sphi 0, %s90
      %s92 = sphi 0, %s90
      %s93 = sphi 0, %s92
      %s107 = sphi 0, %s93
      %s111 = sphi 0, %s111
      %s113 = sphi 0, %s111
      %s114 = sphi 0, %s113
      %s128 = sphi 0, %s114
      %s134 = sphi 0, %s136
      %s137 = sphi 0, %s134
      %s138 = sphi 0, %s137
      %s154 = sphi 0, %s138
    $region4: #{tpu_custom_call.1} parent=1 // loop_header_branch
      %17 = sbr.rel (%p15) target = $region8
    $region5: #{tpu_custom_call.1} parent=1 // loop_body
      %s19 = ssub.s32 %s14, 1
      %s20 = ssub.s32 %s14, 2
      %s21 = sadd.s32 %s14, 1
      %s22 = ssub.s32 %s14, %s21
      %p23 = scmp.eq.s32.totalorder %s22, 0
      %s25 = sadd.s32 %s24, 1
      %s26 = scalar_select %p23, %s24, %s25
      %p29 = pneg %p23
      %p30 = scmp.eq.s32.totalorder %s14, 1
      %p31 = por %p29, %p30
      %p32 = scmp.ne.s32.totalorder %s24, %s27
      %p33 = scmp.eq.s32.totalorder %s14, 0
      %p34 = por %p32, %p33
      %p35 = scmp.ne.s32.totalorder %s24, %s27
      %p36 = scmp.eq.s32.totalorder %s19, 1
      %p37 = por %p35, %p36
      %p38 = scmp.ne.s32.totalorder %s27, %s28
      %p39 = scmp.eq.s32.totalorder %s19, 0
      %p40 = por %p38, %p39
      %p41 = scmp.ne.s32.totalorder %s27, %s28
      %p42 = scmp.eq.s32.totalorder %s20, 1
      %p43 = por %p41, %p42
      %p45 = scmp.ne.s32.totalorder %s28, %s44
      %p46 = scmp.eq.s32.totalorder %s20, 0
      %p47 = por %p45, %p46
      %s49 = sadd.s32 %s48, 1
      %p52 = scmp.eq.s32.totalorder %s14, 1
      %p53 = scmp.ne.s32.totalorder %s48, %s50
      %p54 = scmp.eq.s32.totalorder %s14, 0
      %p55 = por %p53, %p54
      %p56 = scmp.ne.s32.totalorder %s48, %s50
      %p57 = scmp.eq.s32.totalorder %s19, 1
      %p58 = por %p56, %p57
      %p59 = scmp.ne.s32.totalorder %s50, %s51
      %p60 = scmp.eq.s32.totalorder %s19, 0
      %p61 = por %p59, %p60
      %p62 = scmp.ne.s32.totalorder %s50, %s51
      %p63 = scmp.eq.s32.totalorder %s20, 1
      %p64 = por %p62, %p63
      %p66 = scmp.ne.s32.totalorder %s51, %s65
      %p67 = scmp.eq.s32.totalorder %s20, 0
      %p68 = por %p66, %p67
      %s70 = sadd.s32 %s69, 1
      %p73 = scmp.eq.s32.totalorder %s14, 1
      %p74 = scmp.ne.s32.totalorder %s69, %s71
      %p75 = scmp.eq.s32.totalorder %s14, 0
      %p76 = por %p74, %p75
      %p77 = scmp.ne.s32.totalorder %s69, %s71
      %p78 = scmp.eq.s32.totalorder %s19, 1
      %p79 = por %p77, %p78
      %p80 = scmp.ne.s32.totalorder %s71, %s72
      %p81 = scmp.eq.s32.totalorder %s19, 0
      %p82 = por %p80, %p81
      %p83 = scmp.ne.s32.totalorder %s71, %s72
      %p84 = scmp.eq.s32.totalorder %s20, 1
      %p85 = por %p83, %p84
      %p87 = scmp.ne.s32.totalorder %s72, %s86
      %p88 = scmp.eq.s32.totalorder %s20, 0
      %p89 = por %p87, %p88
      %s91 = sadd.s32 %s90, 1
      %p94 = scmp.eq.s32.totalorder %s14, 1
      %p95 = scmp.ne.s32.totalorder %s90, %s92
      %p96 = scmp.eq.s32.totalorder %s14, 0
      %p97 = por %p95, %p96
      %p98 = scmp.ne.s32.totalorder %s90, %s92
      %p99 = scmp.eq.s32.totalorder %s19, 1
      %p100 = por %p98, %p99
      %p101 = scmp.ne.s32.totalorder %s92, %s93
      %p102 = scmp.eq.s32.totalorder %s19, 0
      %p103 = por %p101, %p102
      %p104 = scmp.ne.s32.totalorder %s92, %s93
      %p105 = scmp.eq.s32.totalorder %s20, 1
      %p106 = por %p104, %p105
      %p108 = scmp.ne.s32.totalorder %s93, %s107
      %p109 = scmp.eq.s32.totalorder %s20, 0
      %p110 = por %p108, %p109
      %s112 = sadd.s32 %s111, 1
      %p115 = scmp.eq.s32.totalorder %s14, 1
      %p116 = scmp.ne.s32.totalorder %s111, %s113
      %p117 = scmp.eq.s32.totalorder %s14, 0
      %p118 = por %p116, %p117
      %p119 = scmp.ne.s32.totalorder %s111, %s113
      %p120 = scmp.eq.s32.totalorder %s19, 1
      %p121 = por %p119, %p120
      %p122 = scmp.ne.s32.totalorder %s113, %s114
      %p123 = scmp.eq.s32.totalorder %s19, 0
      %p124 = por %p122, %p123
      %p125 = scmp.ne.s32.totalorder %s113, %s114
      %p126 = scmp.eq.s32.totalorder %s20, 1
      %p127 = por %p125, %p126
      %p129 = scmp.ne.s32.totalorder %s114, %s128
      %p130 = scmp.eq.s32.totalorder %s20, 0
      %p131 = por %p129, %p130
      %s132 = ssub.s32 %s14, %s21
      %p133 = scmp.eq.s32.totalorder %s132, 0
      %s135 = sadd.s32 %s134, 1
      %s136 = scalar_select %p133, %s134, %s135
      %p139 = pneg %p133
      %p140 = scmp.eq.s32.totalorder %s14, 1
      %p141 = por %p139, %p140
      %p142 = scmp.ne.s32.totalorder %s134, %s137
      %p143 = scmp.eq.s32.totalorder %s14, 0
      %p144 = por %p142, %p143
      %p145 = scmp.ne.s32.totalorder %s134, %s137
      %p146 = scmp.eq.s32.totalorder %s19, 1
      %p147 = por %p145, %p146
      %p148 = scmp.ne.s32.totalorder %s137, %s138
      %p149 = scmp.eq.s32.totalorder %s19, 0
      %p150 = por %p148, %p149
      %p151 = scmp.ne.s32.totalorder %s137, %s138
      %p152 = scmp.eq.s32.totalorder %s20, 1
      %p153 = por %p151, %p152
      %p155 = scmp.ne.s32.totalorder %s138, %s154
      %p156 = scmp.eq.s32.totalorder %s20, 0
      %p157 = por %p155, %p156
      %p158 = scmp.le.s32.totalorder 1, %s14
      %p159 = scmp.lt.s32.totalorder %s14, 3
      %p160 = pnand %p158, %p159
      %p161 = pneg %p160
      // Predicated region
      $region9: #{tpu_custom_call.1} parent=5 // pred_check
        _
      $region10: #{tpu_custom_call.1} parent=5 // pred_check_branch
        %163 = sbr.rel (%p160) target = $region12
      $region11: #{tpu_custom_call.1} parent=5 // pred_region
        %s164 = ssub.s32 %s14, 1
        // Predicated region
        $region13: #{tpu_custom_call.1} parent=11 // pred_check
          %p165 = pneg %p61
        $region14: #{tpu_custom_call.1} parent=11 // pred_check_branch
          %167 = sbr.rel (%p165) target = $region16
        $region15: #{tpu_custom_call.1} parent=11 // pred_region
          _
        $region16: #{tpu_custom_call.1} parent=11 // pred_fallthru
          _
        // Predicated region
        $region17: #{tpu_custom_call.1} parent=11 // pred_check
          %p168 = pneg %p82
        $region18: #{tpu_custom_call.1} parent=11 // pred_check_branch
          %170 = sbr.rel (%p168) target = $region20
        $region19: #{tpu_custom_call.1} parent=11 // pred_region
          _
        $region20: #{tpu_custom_call.1} parent=11 // pred_fallthru
          _
        // Predicated region
        $region21: #{tpu_custom_call.1} parent=11 // pred_check
          %p171 = pneg %p103
        $region22: #{tpu_custom_call.1} parent=11 // pred_check_branch
          %173 = sbr.rel (%p171) target = $region24
        $region23: #{tpu_custom_call.1} parent=11 // pred_region
          _
        $region24: #{tpu_custom_call.1} parent=11 // pred_fallthru
          _
        // Predicated region
        $region25: #{tpu_custom_call.1} parent=11 // pred_check
          %p174 = pneg %p124
        $region26: #{tpu_custom_call.1} parent=11 // pred_check_branch
          %176 = sbr.rel (%p174) target = $region28
        $region27: #{tpu_custom_call.1} parent=11 // pred_region
          _
        $region28: #{tpu_custom_call.1} parent=11 // pred_fallthru
          _
      $region12: #{tpu_custom_call.1} parent=5 // pred_fallthru
        _
      %p177 = scmp.lt.s32.totalorder %s14, 2
      // Predicated region
      $region29: #{tpu_custom_call.1} parent=5 // pred_check
        %p178 = pneg %p177
      $region30: #{tpu_custom_call.1} parent=5 // pred_check_branch
        %180 = sbr.rel (%p178) target = $region32
      $region31: #{tpu_custom_call.1} parent=5 // pred_region
        // Predicated region
        $region33: #{tpu_custom_call.1} parent=31 // pred_check
          %p181 = pneg %p34
        $region34: #{tpu_custom_call.1} parent=31 // pred_check_branch
          %183 = sbr.rel (%p181) target = $region36
        $region35: #{tpu_custom_call.1} parent=31 // pred_region
          %p184 = scmp.lt.s32.totalorder %s14, 1
          %s185 = scalar_select %p184, %s14, 1
          %s186 = smul.addr %s185, 8
          %s187 = scalar_lea.vmem %s0, %s186
        $region36: #{tpu_custom_call.1} parent=31 // pred_fallthru
          _
      $region32: #{tpu_custom_call.1} parent=5 // pred_fallthru
        _
      %p188 = scmp.le.s32.totalorder 1, %s14
      %p189 = scmp.lt.s32.totalorder %s14, 3
      %p190 = pnand %p188, %p189
      %p191 = pneg %p190
      // Predicated region
      $region37: #{tpu_custom_call.1} parent=5 // pred_check
        _
      $region38: #{tpu_custom_call.1} parent=5 // pred_check_branch
        %193 = sbr.rel (%p190) target = $region40
      $region39: #{tpu_custom_call.1} parent=5 // pred_region
        %s194 = ssub.s32 %s14, 1
        %p195 = scmp.lt.s32.totalorder %s19, 1
        %s196 = scalar_select %p195, %s19, 1
        %s197 = smul.addr %s196, 8
        %s198 = scalar_lea.vmem %s0, %s197
        %p199 = pneg %p40
        %p200 = pneg %p37
        %p201 = pneg %p61
        %p202 = pneg %p58
        %p203 = pneg %p82
        %p204 = pneg %p79
        %p205 = pneg %p103
        %p206 = pneg %p100
        %p207 = pneg %p124
        %p208 = pneg %p121
        %p209 = pneg %p150
        %p210 = pneg %p147
        %s211 = sand.u32 %s137, 1
        %s212 = scalar_lea.sflag [#allocation3], %s211
        %s213 = sand.u32 %s137, 1
        %s214 = smul.addr %s213, 8
        %s215 = scalar_lea.vmem [#allocation2], %s214
        %p216 = scmp.lt.s32.totalorder %s19, 1
        %s217 = scalar_select %p216, %s19, 1
        %s218 = smul.addr %s217, 8
        %s219 = scalar_lea.vmem %s0, %s218
        %v220 = vld [vmem:[%s219] sm:$0xff]
        %v221 = vld [vmem:[%s1] sm:$0xff]
        %v222 = vld [vmem:[%s1 + $0x8] sm:$0xff]
        %v223 = vld [vmem:[%s1 + $0x10] sm:$0xff]
        %v224 = vld [vmem:[%s1 + $0x18] sm:$0xff]
        %v225 = vld [vmem:[%s2] sm:$0x1]
        %v227 = vperm.slane %v225, 0
        %vm229 = vcmask 261120
        %v231 = vsel %vm229, %v220, 0
        %233 = vmatpush.msra.mxu0 0.0
        %234 = vmatpush.msra.mxu0 0.0
        %235 = vmatpush.msra.mxu0 0.0
        %236 = vmatpush.msra.mxu0 0.0
        %237 = vmatpush.msra.mxu0 0.0
        %238 = vmatpush.msra.mxu0 0.0
        %239 = vmatpush.msra.mxu0 0.0
        %240 = vmatpush.msra.mxu0 0.0
        %241 = vmatpush.msra.mxu0 0.0
        %242 = vmatpush.msra.mxu0 0.0
        %243 = vmatpush.msra.mxu0 0.0
        %244 = vmatpush.msra.mxu0 0.0
        %245 = vmatpush.msra.mxu0 %v224
        %246 = vmatpush.msra.mxu0 %v223
        %247 = vmatpush.msra.mxu0 %v222
        %248 = vmatpush.msra.mxu0 %v221
        %249 = vmatmul.f32.gmra.mxu0 %v231
        %v250 = vpop.f32.mrf.mxu0
        %v251 = vadd.f32 %v227, %v250
        %252 = vdwg.mxu0
        %v253 = vmul.f32 %v251, %v251
        %v254 = vmul.f32 %v251, %v253
        %v255 = vmul.f32 %v254, 0.044715
        %v256 = vadd.f32 %v251, %v255
        %v257 = vmul.f32 %v256, 0.7978846
        %v258 = vtanh.pop %v257
        %v259 = vadd.f32 %v258, 1.0
        %v260 = vmul.f32 %v259, 0.5
        %v261 = vmul.f32 %v251, %v260
        %v262 = vld [vmem:[%s3] sm:$0xff]
        %v263 = vld [vmem:[%s3 + $0x8] sm:$0xff]
        %v264 = vld [vmem:[%s3 + $0x10] sm:$0xff]
        %v265 = vld [vmem:[%s3 + $0x18] sm:$0xff]
        %v266 = vld [vmem:[%s3 + $0x20] sm:$0xff]
        %v267 = vld [vmem:[%s3 + $0x28] sm:$0xff]
        %v268 = vld [vmem:[%s3 + $0x30] sm:$0xff]
        %v269 = vld [vmem:[%s3 + $0x38] sm:$0xff]
        %v270 = vld [vmem:[%s3 + $0x40] sm:$0xff]
        %v271 = vld [vmem:[%s3 + $0x48] sm:$0xff]
        %v272 = vld [vmem:[%s3 + $0x50] sm:$0xff]
        %v273 = vld [vmem:[%s3 + $0x58] sm:$0xff]
        %v274 = vld [vmem:[%s3 + $0x60] sm:$0xff]
        %v275 = vld [vmem:[%s3 + $0x68] sm:$0xff]
        %v276 = vld [vmem:[%s3 + $0x70] sm:$0xff]
        %v277 = vld [vmem:[%s3 + $0x78] sm:$0xff]
        %v278 = vld [vmem:[%s4] sm:$0x1]
        %v280 = vperm.slane %v278, 0
        %282 = vmatpush.msra.mxu0 %v277
        %283 = vmatpush.msra.mxu0 %v276
        %284 = vmatpush.msra.mxu0 %v275
        %285 = vmatpush.msra.mxu0 %v274
        %286 = vmatpush.msra.mxu0 %v273
        %287 = vmatpush.msra.mxu0 %v272
        %288 = vmatpush.msra.mxu0 %v271
        %289 = vmatpush.msra.mxu0 %v270
        %290 = vmatpush.msra.mxu0 %v269
        %291 = vmatpush.msra.mxu0 %v268
        %292 = vmatpush.msra.mxu0 %v267
        %293 = vmatpush.msra.mxu0 %v266
        %294 = vmatpush.msra.mxu0 %v265
        %295 = vmatpush.msra.mxu0 %v264
        %296 = vmatpush.msra.mxu0 %v263
        %297 = vmatpush.msra.mxu0 %v262
        %298 = vmatmul.f32.gmra.mxu0 %v261
        %v299 = vpop.f32.mrf.mxu0
        %v300 = vadd.f32 %v280, %v299
        %301 = vdwg.mxu0
        %302 = vst.msk [vmem:[%s215] sm:$0xff] %vm229, %v300
        %s303 = sand.u32 %s137, 1
        %s304 = scalar_lea.sflag [#allocation3], %s303
        %s305 = sand.u32 %s137, 1
        %s306 = smul.addr %s305, 8
        %s307 = scalar_lea.vmem [#allocation2], %s306
        // Predicated region
        $region41: #{tpu_custom_call.1} parent=39 // pred_check
          %p308 = pneg %p147
        $region42: #{tpu_custom_call.1} parent=39 // pred_check_branch
          %310 = sbr.rel (%p308) target = $region44
        $region43: #{tpu_custom_call.1} parent=39 // pred_region
          %312 = vsyncadd %s304, 0
          %s313 = smul.addr %s19, 8
          %s314 = scalar_lea.hbm %s5, %s313
          %s316 = sshll.u32 %s307, 4
          %s317 = int_to_ptr.vmem [resolvable:$true] %s316
          %s318 = sshll.u32 %s314, 4
          %s319 = int_to_ptr.hbm [resolvable:$true] %s318
          %321 = dma.vmem_to_hbm [thread:$0]  %s317, 128, %s319, %s304
        $region44: #{tpu_custom_call.1} parent=39 // pred_fallthru
          _
      $region40: #{tpu_custom_call.1} parent=5 // pred_fallthru
        _
      %p322 = scmp.le.s32.totalorder 2, %s14
      // Predicated region
      $region45: #{tpu_custom_call.1} parent=5 // pred_check
        %p323 = pneg %p322
      $region46: #{tpu_custom_call.1} parent=5 // pred_check_branch
        %325 = sbr.rel (%p323) target = $region48
      $region47: #{tpu_custom_call.1} parent=5 // pred_region
        %s326 = ssub.s32 %s14, 2
        // Predicated region
        $region49: #{tpu_custom_call.1} parent=47 // pred_check
          %p327 = pneg %p153
        $region50: #{tpu_custom_call.1} parent=47 // pred_check_branch
          %329 = sbr.rel (%p327) target = $region52
        $region51: #{tpu_custom_call.1} parent=47 // pred_region
          %s330 = sand.u32 %s138, 1
          %s331 = scalar_lea.sflag [#allocation3], %s330
          %s332 = sand.u32 %s138, 1
          %s333 = smul.addr %s332, 8
          %s334 = scalar_lea.vmem [#allocation2], %s333
          %336 = dma.done %s331, 128
        $region52: #{tpu_custom_call.1} parent=47 // pred_fallthru
          _
      $region48: #{tpu_custom_call.1} parent=5 // pred_fallthru
        _
    $region6: #{tpu_custom_call.1} parent=1 // loop_footer
      %s18 = sadd.s32 1, %s14
    $region7: #{tpu_custom_call.1} parent=1 // loop_footer_branch
      %13 = sbr.rel target = $region3
    $region8: #{tpu_custom_call.1} parent=1 // loop_exit
      _
    %337 = vsyncpa [#allocation3], 1
    %s338 = scalar_lea.sflag [#allocation3], 1
    %339 = vsyncpa %s338, 1

</llo_original>
